<compile_context>
chip_gen: v6e
topology: v6e:2x2x1
jax: 0.10.0
libtpu: 0.0.40
codegen_flags: <defaults>
</compile_context>

<pallas_src>
import functools
import math

import numpy as np
import jax
import jax.numpy as jnp
from jax.experimental import pallas as pl
from jax.experimental.pallas import tpu as pltpu

H = 64          # hidden size of the (synthetic) BERT encoder
NS_MAX = 16     # fixed cap: #tables + #columns + #values per example
LQ_MAX = 16     # fixed cap: #question tokens + [SEP]
HEAD_W = 8      # tbl(2) | col(2) | val(2) | zero pad(2)
OUT_W = 128     # lane-dense output slab: [0,LQ_MAX) weights, [LQ_MAX,LQ_MAX+6) logits
R = NS_MAX + LQ_MAX


# ----------------------------- Pallas kernel ------------------------------

def _spider_fused_kernel(hidden_ref,               # VMEM [BT, S, H]  bf16
                         idx_ref,                  # VMEM [BT, R, 1]  int32 (schema rows | question rows)
                         nq_ref,                   # VMEM [BT, 1]     int32 (#question tokens + SEP)
                         wqk_ref, bqk_ref,         # VMEM [H, 2H] bf16, [1, 2H] f32 (resident)
                         whd_ref, bhd_ref,         # VMEM [H, HEAD_W] bf16, [1, HEAD_W] f32 (resident)
                         out_ref,                  # VMEM [BT, NS_MAX, OUT_W] f32
                         *, BT, S, H):
    # 1) Gather-first: one stacked one-hot selection matrix per example.
    h = hidden_ref[...]                                                  # [BT, S, H] bf16
    sel = jnp.where(
        jax.lax.broadcasted_iota(jnp.int32, (BT, R, S), 2) == idx_ref[...],
        1.0, 0.0).astype(jnp.bfloat16)                                   # [BT, R, S]
    gathered = jnp.einsum('brs,bsh->brh', sel, h,
                          preferred_element_type=jnp.float32)            # [BT, R, H] f32

    # 2) Fused lane-dense Q|K projection on the STACKED gathered rows
    #    ([BT*R, H] @ [H, 128] fills the MXU M dim). 1/sqrt(H) is already
    #    folded into the Q columns of wqk/bqk.
    g2 = gathered.reshape(BT * R, H).astype(jnp.bfloat16)
    proj = jnp.dot(g2, wqk_ref[...],
                   preferred_element_type=jnp.float32) + bqk_ref[...]    # [BT*R, 2H] f32
    proj = proj.reshape(BT, R, 2 * H)
    q = proj[:, :NS_MAX, :H].astype(jnp.bfloat16)                        # [BT, NS_MAX, H]
    k = proj[:, NS_MAX:, H:].astype(jnp.bfloat16)                        # [BT, LQ_MAX, H]

    # 3) Tiny head matmul only on the gathered schema rows.
    sch = gathered[:, :NS_MAX, :].reshape(BT * NS_MAX, H).astype(jnp.bfloat16)
    logits = (jnp.dot(sch, whd_ref[...], preferred_element_type=jnp.float32)
              + bhd_ref[...]).reshape(BT, NS_MAX, HEAD_W)                # [BT, NS_MAX, 8]

    # 4) Scores (scale pre-folded), per-example key-length mask, softmax.
    scores = jnp.einsum('bnh,bmh->bnm', q, k,
                        preferred_element_type=jnp.float32)              # [BT, NS_MAX, LQ_MAX]
    nq = nq_ref[...].reshape(BT, 1, 1)
    col_ids = jax.lax.broadcasted_iota(jnp.int32, (BT, NS_MAX, LQ_MAX), 2)
    scores = jnp.where(col_ids < nq, scores, jnp.float32(-1e30))
    m = jnp.max(scores, axis=-1, keepdims=True)
    e = jnp.exp(scores - m)
    # NOTE: approx reciprocal (EUP) -> ~1e-3 rel error vs exact division;
    # switch to exact division if strict PyTorch softmax parity is required.
    w = e * pl.reciprocal(jnp.sum(e, axis=-1, keepdims=True), approx=True)

    # 5) One full-lane-width store: [weights | head logits | zero pad].
    pad = jnp.zeros((BT, NS_MAX, OUT_W - LQ_MAX - HEAD_W), jnp.float32)
    out_ref[...] = jnp.concatenate([w, logits, pad], axis=-1)            # [BT, NS_MAX, OUT_W]


# ----------------------------- wrapper -------------------------------------

def _round_up(x, m):
    return ((x + m - 1) // m) * m


def spider_alignment_forward(bert_outputs, meta_index, params):
    """Mirrors SpiderAlignmentModel.forward: one fused, batch-blocked pallas_call,
    then a single host transfer + numpy slicing into ragged per-example lists."""
    B, S, Hd = bert_outputs.shape

    n_tbl = [len(m['tbl_encode_indices']) for m in meta_index]
    n_col = [len(m['col_encode_indices']) for m in meta_index]
    n_val = [len(m['val_encode_indices']) for m in meta_index]
    n_sch = [t + c + v for t, c, v in zip(n_tbl, n_col, n_val)]
    n_q = [len(m['question_encode_indices']) + 1 for m in meta_index]    # + [SEP]
    assert max(n_sch) <= NS_MAX and max(n_q) <= LQ_MAX, "fixed caps exceeded"

    # Batch blocking: BT examples per grid step.
    if B <= 8:
        BT, B_pad = B, B
    else:
        BT, B_pad = 8, _round_up(B, 8)

    hidden = bert_outputs.astype(jnp.bfloat16)
    if B_pad > B:
        hidden = jnp.concatenate(
            [hidden, jnp.zeros((B_pad - B, S, Hd), jnp.bfloat16)], axis=0)

    # Host-side packing of the ragged index lists into static padded arrays.
    idx = np.zeros((B_pad, R, 1), np.int32)        # rows [0,NS_MAX): schema; [NS_MAX,R): question+SEP
    nq_arr = np.ones((B_pad, 1), np.int32)
    for b, m in enumerate(meta_index):
        flat = (list(m['tbl_encode_indices']) + list(m['col_encode_indices'])
                + list(m['val_encode_indices']))
        idx[b, :len(flat), 0] = flat
        qq = list(m['question_encode_indices']) + [m['question_sep_index']]
        idx[b, NS_MAX:NS_MAX + len(qq), 0] = qq
        nq_arr[b, 0] = len(qq)

    kernel = functools.partial(_spider_fused_kernel, BT=BT, S=S, H=Hd)

    grid_spec = pltpu.PrefetchScalarGridSpec(
        num_scalar_prefetch=0,
        grid=(B_pad // BT,),
        in_specs=[
            pl.BlockSpec((BT, S, Hd), lambda i: (i, 0, 0)),      # hidden block
            pl.BlockSpec((BT, R, 1), lambda i: (i, 0, 0)),       # stacked row ids
            pl.BlockSpec((BT, 1), lambda i: (i, 0)),             # valid question length
            # Resident weights (constant index_map -> DMA'd once, stay in VMEM).
            # At BERT-base sizes, add pipeline_mode=pl.Buffered(1) + vmem_limit_bytes
            # to single-buffer these on v5e's 16 MiB scoped-VMEM default.
            pl.BlockSpec((Hd, 2 * Hd), lambda i: (0, 0)),        # fused Q|K weight
            pl.BlockSpec((1, 2 * Hd), lambda i: (0, 0)),         # fused Q|K bias
            pl.BlockSpec((Hd, HEAD_W), lambda i: (0, 0)),        # head weight
            pl.BlockSpec((1, HEAD_W), lambda i: (0, 0)),         # head bias
        ],
        out_specs=pl.BlockSpec((BT, NS_MAX, OUT_W), lambda i: (i, 0, 0)),
    )

    out = pl.pallas_call(
        kernel,
        out_shape=jax.ShapeDtypeStruct((B_pad, NS_MAX, OUT_W), jnp.float32),
        grid_spec=grid_spec,
        compiler_params=pltpu.CompilerParams(dimension_semantics=("parallel",)),
    )(hidden, jnp.asarray(idx), jnp.asarray(nq_arr),
      params['w_qk'], params['b_qk'], params['w_head'], params['b_head'])

    # One device->host transfer; all ragged un-padding is numpy slicing.
    out_np = np.asarray(jax.device_get(out))
    table_logits, column_logits, value_logits, align_weights = [], [], [], []
    for b in range(B):
        nt, nc, nv, nqb = n_tbl[b], n_col[b], n_val[b], n_q[b]
        ns = nt + nc + nv
        table_logits.append(out_np[b, :nt, LQ_MAX:LQ_MAX + 2])
        column_logits.append(out_np[b, nt:nt + nc, LQ_MAX + 2:LQ_MAX + 4])
        value_logits.append(out_np[b, nt + nc:ns, LQ_MAX + 4:LQ_MAX + 6])
        align_weights.append(out_np[b, :ns, :nqb - 1])                   # drop the SEP column
    return {'table_logits': table_logits,
            'column_logits': column_logits,
            'value_logits': value_logits,
            'alignment_weights': align_weights}


# ----------------------------- parameter init -----------------------------

def init_params(key, hidden=H):
    ks = jax.random.split(key, 5)

    def lin(k, din, dout):
        kw, kb = jax.random.split(k)
        w = jax.random.normal(kw, (dout, din), jnp.float32) * 0.05       # torch Linear [out, in]
        b = jax.random.normal(kb, (dout,), jnp.float32) * 0.05
        return w, b

    wq, bq = lin(ks[0], hidden, hidden)      # AttentivePointer.linear_query
    wk, bk = lin(ks[1], hidden, hidden)      # AttentivePointer.linear_key
    # TODO(synk): AttentivePointer.linear_value / linear_out are omitted — forward()
    # discards alignment_outputs, so that branch is dead in the forward pass.
    wt, bt = lin(ks[2], hidden, 2)           # linear_out_tbl
    wc, bc = lin(ks[3], hidden, 2)           # linear_out_col
    wv, bv = lin(ks[4], hidden, 2)           # linear_out_val

    inv_sqrt = 1.0 / math.sqrt(float(hidden))
    # Lane-dense fused [H, 2H] = [H, 128] Q|K weight; 1/sqrt(H) folded into Q.
    w_qk = jnp.concatenate([wq.T * inv_sqrt, wk.T], axis=1).astype(jnp.bfloat16)
    b_qk = jnp.concatenate([bq * inv_sqrt, bk]).reshape(1, -1).astype(jnp.float32)
    # Separate tiny [H, 8] head weight (tbl | col | val | zero pad).
    w_head = jnp.concatenate(
        [wt.T, wc.T, wv.T, jnp.zeros((hidden, HEAD_W - 6), jnp.float32)],
        axis=1).astype(jnp.bfloat16)
    b_head = jnp.concatenate(
        [bt, bc, bv, jnp.zeros((HEAD_W - 6,), jnp.float32)]).reshape(1, -1)

    return {'wq': wq, 'bq': bq, 'wk': wk, 'bk': bk,
            'tbl_w': wt, 'tbl_b': bt, 'col_w': wc, 'col_b': bc,
            'val_w': wv, 'val_b': bv,
            'w_qk': w_qk, 'b_qk': b_qk, 'w_head': w_head, 'b_head': b_head}


# ----------------------------- main ----------------------------------------

if __name__ == "__main__":
    key = jax.random.PRNGKey(0)
    k_params, k_bert = jax.random.split(key)
    params = init_params(k_params)

    B, S = 2, 32
    # TODO(synk): BertModel.from_pretrained encoder is not reimplemented; its
    # last_hidden_state is provided directly as a synthetic input tensor.
    bert_outputs = jax.random.normal(k_bert, (B, S, H), jnp.float32)

    meta_index = [
        dict(question_encode_indices=list(range(1, 9)), question_sep_index=9,
             tbl_encode_indices=[10, 13, 16],
             col_encode_indices=[11, 12, 14, 15, 17],
             val_encode_indices=[20, 21]),
        dict(question_encode_indices=list(range(1, 7)), question_sep_index=7,
             tbl_encode_indices=[8, 11],
             col_encode_indices=[9, 10, 12, 13],
             val_encode_indices=[15]),
    ]

    out = spider_alignment_forward(bert_outputs, meta_index, params)
    jax.block_until_ready(jax.tree_util.tree_leaves(out))

    # pure-JAX reference check (alignment weights + all three logit heads)
    hp = jax.lax.Precision.HIGHEST
    for b, meta in enumerate(meta_index):
        hidden = bert_outputs[b]
        q_idx = jnp.asarray(meta['question_encode_indices'] + [meta['question_sep_index']])
        qo = hidden[q_idx]
        tbl = hidden[jnp.asarray(meta['tbl_encode_indices'])]
        col = hidden[jnp.asarray(meta['col_encode_indices'])]
        val = hidden[jnp.asarray(meta['val_encode_indices'])]
        schema = jnp.concatenate([tbl, col, val], axis=0)

        q = jnp.dot(schema, params['wq'].T, precision=hp) + params['bq']
        k = jnp.dot(qo, params['wk'].T, precision=hp) + params['bk']
        ref_w = jax.nn.softmax(jnp.dot(q, k.T, precision=hp) / math.sqrt(H), axis=-1)[:, :-1]
        assert jnp.allclose(out['alignment_weights'][b], ref_w, atol=2e-2, rtol=2e-2)

        ref_tbl = jnp.dot(tbl, params['tbl_w'].T, precision=hp) + params['tbl_b']
        ref_col = jnp.dot(col, params['col_w'].T, precision=hp) + params['col_b']
        ref_val = jnp.dot(val, params['val_w'].T, precision=hp) + params['val_b']
        assert jnp.allclose(out['table_logits'][b], ref_tbl, atol=2e-2, rtol=2e-2)
        assert jnp.allclose(out['column_logits'][b], ref_col, atol=2e-2, rtol=2e-2)
        assert jnp.allclose(out['value_logits'][b], ref_val, atol=2e-2, rtol=2e-2)

    print("KERNEL_OK")
</pallas_src>

<mosaic_0001>
module attributes {stable_mosaic.version = 11 : i64} {
  func.func @_spider_fused_kernel(%arg0: i32, %arg1: memref<2x32x64xbf16, #tpu.memory_space<vmem>>, %arg2: memref<2x32x1xi32, #tpu.memory_space<vmem>>, %arg3: memref<2x1xi32, #tpu.memory_space<vmem>>, %arg4: memref<64x128xbf16, #tpu.memory_space<vmem>>, %arg5: memref<1x128xf32, #tpu.memory_space<vmem>>, %arg6: memref<64x8xbf16, #tpu.memory_space<vmem>>, %arg7: memref<1x8xf32, #tpu.memory_space<vmem>>, %arg8: memref<2x16x128xf32, #tpu.memory_space<vmem>>) attributes {dimension_semantics = [#tpu.dimension_semantics<parallel>], iteration_bounds = array<i64: 1>, scalar_prefetch = 0 : i64, scratch_operands = 0 : i64, tpu.core_type = #tpu.core_type<tc>, window_params = [{transform_indices = @transform_0, window_bounds = array<i64: 2, 32, 64>}, {transform_indices = @transform_1, window_bounds = array<i64: 2, 32, 1>}, {transform_indices = @transform_2, window_bounds = array<i64: 2, 1>}, {pipeline_mode = #tpu.pipeline_mode<synchronous>, transform_indices = @transform_3, window_bounds = array<i64: 64, 128>}, {pipeline_mode = #tpu.pipeline_mode<synchronous>, transform_indices = @transform_4, window_bounds = array<i64: 1, 128>}, {pipeline_mode = #tpu.pipeline_mode<synchronous>, transform_indices = @transform_5, window_bounds = array<i64: 64, 8>}, {pipeline_mode = #tpu.pipeline_mode<synchronous>, transform_indices = @transform_6, window_bounds = array<i64: 1, 8>}, {transform_indices = @transform_7, window_bounds = array<i64: 2, 16, 128>}]} {
    %c0 = arith.constant 0 : index
    %c0_0 = arith.constant 0 : index
    %c0_1 = arith.constant 0 : index
    %0 = vector.load %arg1[%c0, %c0_0, %c0_1] : memref<2x32x64xbf16, #tpu.memory_space<vmem>>, vector<2x32x64xbf16>
    %1 = tpu.iota {dimensions = array<i32: 2>} : vector<2x32x32xi32>
    %c0_2 = arith.constant 0 : index
    %c0_3 = arith.constant 0 : index
    %c0_4 = arith.constant 0 : index
    %2 = vector.load %arg2[%c0_2, %c0_3, %c0_4] : memref<2x32x1xi32, #tpu.memory_space<vmem>>, vector<2x32x1xi32>
    %3 = vector.broadcast %2 : vector<2x32x1xi32> to vector<2x32x32xi32>
    %4 = arith.cmpi eq, %1, %3 : vector<2x32x32xi32>
    %cst = arith.constant 1.000000e+00 : f32
    %cst_5 = arith.constant 0.000000e+00 : f32
    %5 = vector.broadcast %cst : f32 to vector<2x32x32xf32>
    %6 = vector.broadcast %cst_5 : f32 to vector<2x32x32xf32>
    %7 = arith.select %4, %5, %6 : vector<2x32x32xi1>, vector<2x32x32xf32>
    %8 = arith.truncf %7 : vector<2x32x32xf32> to vector<2x32x32xbf16>
    "tpu.trace_start"() <{level = 10 : i32, message = "brs,bsh->brh"}> : () -> ()
    %cst_6 = arith.constant dense<0.000000e+00> : vector<2x32x64xf32>
    %9 = tpu.matmul %8, %0, %cst_6 {dimension_numbers = #tpu.dot_dimension_numbers<[2], [1], [1], [2], [0, 0, 0, 1, 1, 2], [0], [0]>} : vector<2x32x32xbf16>, vector<2x32x64xbf16>, vector<2x32x64xf32> -> vector<2x32x64xf32>
    "tpu.trace_stop"() : () -> ()
    %10 = vector.shape_cast %9 : vector<2x32x64xf32> to vector<64x64xf32>
    %11 = arith.truncf %10 : vector<64x64xf32> to vector<64x64xbf16>
    %c0_7 = arith.constant 0 : index
    %c0_8 = arith.constant 0 : index
    %12 = vector.load %arg4[%c0_7, %c0_8] : memref<64x128xbf16, #tpu.memory_space<vmem>>, vector<64x128xbf16>
    %cst_9 = arith.constant dense<0.000000e+00> : vector<64x128xf32>
    %13 = tpu.matmul %11, %12, %cst_9 {dimension_numbers = #tpu.dot_dimension_numbers<[1], [0], [0], [1], [0, 0, 1, 1], [], []>} : vector<64x64xbf16>, vector<64x128xbf16>, vector<64x128xf32> -> vector<64x128xf32>
    %c0_10 = arith.constant 0 : index
    %c0_11 = arith.constant 0 : index
    %14 = vector.load %arg5[%c0_10, %c0_11] : memref<1x128xf32, #tpu.memory_space<vmem>>, vector<1x128xf32>
    %15 = vector.broadcast %14 : vector<1x128xf32> to vector<64x128xf32>
    %16 = arith.addf %13, %15 : vector<64x128xf32>
    %17 = vector.shape_cast %16 : vector<64x128xf32> to vector<2x32x128xf32>
    %18 = vector.extract_strided_slice %17 {offsets = [0, 0, 0], sizes = [2, 16, 64], strides = [1, 1, 1]} : vector<2x32x128xf32> to vector<2x16x64xf32>
    %19 = arith.truncf %18 : vector<2x16x64xf32> to vector<2x16x64xbf16>
    %20 = vector.extract_strided_slice %17 {offsets = [0, 16, 64], sizes = [2, 16, 64], strides = [1, 1, 1]} : vector<2x32x128xf32> to vector<2x16x64xf32>
    %21 = arith.truncf %20 : vector<2x16x64xf32> to vector<2x16x64xbf16>
    %22 = vector.extract_strided_slice %9 {offsets = [0, 0, 0], sizes = [2, 16, 64], strides = [1, 1, 1]} : vector<2x32x64xf32> to vector<2x16x64xf32>
    %23 = vector.shape_cast %22 : vector<2x16x64xf32> to vector<32x64xf32>
    %24 = arith.truncf %23 : vector<32x64xf32> to vector<32x64xbf16>
    %c0_12 = arith.constant 0 : index
    %c0_13 = arith.constant 0 : index
    %25 = vector.load %arg6[%c0_12, %c0_13] : memref<64x8xbf16, #tpu.memory_space<vmem>>, vector<64x8xbf16>
    %cst_14 = arith.constant dense<0.000000e+00> : vector<32x8xf32>
    %26 = tpu.matmul %24, %25, %cst_14 {dimension_numbers = #tpu.dot_dimension_numbers<[1], [0], [0], [1], [0, 0, 1, 1], [], []>} : vector<32x64xbf16>, vector<64x8xbf16>, vector<32x8xf32> -> vector<32x8xf32>
    %c0_15 = arith.constant 0 : index
    %c0_16 = arith.constant 0 : index
    %27 = vector.load %arg7[%c0_15, %c0_16] : memref<1x8xf32, #tpu.memory_space<vmem>>, vector<1x8xf32>
    %28 = vector.broadcast %27 : vector<1x8xf32> to vector<32x8xf32>
    %29 = arith.addf %26, %28 : vector<32x8xf32>
    %30 = vector.shape_cast %29 : vector<32x8xf32> to vector<2x16x8xf32>
    "tpu.trace_start"() <{level = 10 : i32, message = "bnh,bmh->bnm"}> : () -> ()
    %cst_17 = arith.constant dense<0.000000e+00> : vector<2x16x16xf32>
    %31 = tpu.matmul %19, %21, %cst_17 {dimension_numbers = #tpu.dot_dimension_numbers<[2], [2], [1], [1], [0, 0, 0, 1, 1, 1], [0], [0]>} : vector<2x16x64xbf16>, vector<2x16x64xbf16>, vector<2x16x16xf32> -> vector<2x16x16xf32>
    "tpu.trace_stop"() : () -> ()
    %c0_18 = arith.constant 0 : index
    %c0_19 = arith.constant 0 : index
    %32 = vector.load %arg3[%c0_18, %c0_19] : memref<2x1xi32, #tpu.memory_space<vmem>>, vector<2x1xi32>
    %33 = vector.shape_cast %32 : vector<2x1xi32> to vector<2x1x1xi32>
    %34 = tpu.iota {dimensions = array<i32: 2>} : vector<2x16x16xi32>
    %35 = vector.broadcast %33 : vector<2x1x1xi32> to vector<2x16x16xi32>
    %36 = arith.cmpi slt, %34, %35 : vector<2x16x16xi32>
    %cst_20 = arith.constant -1.000000e+30 : f32
    %37 = vector.broadcast %cst_20 : f32 to vector<2x16x16xf32>
    %38 = arith.select %36, %31, %37 : vector<2x16x16xi1>, vector<2x16x16xf32>
    %cst_21 = arith.constant dense<0xFF800000> : vector<2x16xf32>
    %39 = vector.multi_reduction <maximumf>, %38, %cst_21 [2] : vector<2x16x16xf32> to vector<2x16xf32>
    %40 = vector.shape_cast %39 : vector<2x16xf32> to vector<2x16x1xf32>
    %41 = vector.broadcast %40 : vector<2x16x1xf32> to vector<2x16x16xf32>
    %42 = arith.subf %38, %41 : vector<2x16x16xf32>
    %43 = math.exp %42 : vector<2x16x16xf32>
    %cst_22 = arith.constant dense<0.000000e+00> : vector<2x16xf32>
    %44 = vector.multi_reduction <add>, %43, %cst_22 [2] : vector<2x16x16xf32> to vector<2x16xf32>
    %45 = vector.shape_cast %44 : vector<2x16xf32> to vector<2x16x1xf32>
    %46 = tpu.reciprocal %45 {approx = true} : vector<2x16x1xf32> -> vector<2x16x1xf32>
    %47 = vector.broadcast %46 : vector<2x16x1xf32> to vector<2x16x16xf32>
    %48 = arith.mulf %43, %47 : vector<2x16x16xf32>
    %cst_23 = arith.constant 0.000000e+00 : f32
    %49 = vector.broadcast %cst_23 : f32 to vector<2x16x104xf32>
    %50 = tpu.concatenate %48, %30, %49 in 2 : vector<2x16x16xf32>, vector<2x16x8xf32>, vector<2x16x104xf32> -> vector<2x16x128xf32>
    %c0_24 = arith.constant 0 : index
    %c0_25 = arith.constant 0 : index
    %c0_26 = arith.constant 0 : index
    %51 = vector.load %arg8[%c0_24, %c0_25, %c0_26] : memref<2x16x128xf32, #tpu.memory_space<vmem>>, vector<2x16x128xf32>
    tpu.vector_store %arg8[%c0_24, %c0_25, %c0_26], %50 {strides = array<i32>} : memref<2x16x128xf32, #tpu.memory_space<vmem>>, vector<2x16x128xf32>,
    return
  }
  func.func @transform_0(%arg0: i32) -> (i32, i32, i32) {
    %c0_i32 = arith.constant 0 : i32
    %c0_i32_0 = arith.constant 0 : i32
    %c0_i32_1 = arith.constant 0 : i32
    return %arg0, %c0_i32, %c0_i32_0 : i32, i32, i32
  }
  func.func @transform_1(%arg0: i32) -> (i32, i32, i32) {
    %c0_i32 = arith.constant 0 : i32
    %c0_i32_0 = arith.constant 0 : i32
    %c0_i32_1 = arith.constant 0 : i32
    return %arg0, %c0_i32, %c0_i32_0 : i32, i32, i32
  }
  func.func @transform_2(%arg0: i32) -> (i32, i32) {
    %c0_i32 = arith.constant 0 : i32
    %c0_i32_0 = arith.constant 0 : i32
    return %arg0, %c0_i32 : i32, i32
  }
  func.func @transform_3(%arg0: i32) -> (i32, i32) {
    %c0_i32 = arith.constant 0 : i32
    %c0_i32_0 = arith.constant 0 : i32
    %c0_i32_1 = arith.constant 0 : i32
    return %c0_i32, %c0_i32_0 : i32, i32
  }
  func.func @transform_4(%arg0: i32) -> (i32, i32) {
    %c0_i32 = arith.constant 0 : i32
    %c0_i32_0 = arith.constant 0 : i32
    %c0_i32_1 = arith.constant 0 : i32
    return %c0_i32, %c0_i32_0 : i32, i32
  }
  func.func @transform_5(%arg0: i32) -> (i32, i32) {
    %c0_i32 = arith.constant 0 : i32
    %c0_i32_0 = arith.constant 0 : i32
    %c0_i32_1 = arith.constant 0 : i32
    return %c0_i32, %c0_i32_0 : i32, i32
  }
  func.func @transform_6(%arg0: i32) -> (i32, i32) {
    %c0_i32 = arith.constant 0 : i32
    %c0_i32_0 = arith.constant 0 : i32
    %c0_i32_1 = arith.constant 0 : i32
    return %c0_i32, %c0_i32_0 : i32, i32
  }
  func.func @transform_7(%arg0: i32) -> (i32, i32, i32) {
    %c0_i32 = arith.constant 0 : i32
    %c0_i32_0 = arith.constant 0 : i32
    %c0_i32_1 = arith.constant 0 : i32
    return %arg0, %c0_i32, %c0_i32_0 : i32, i32, i32
  }
}

</mosaic_0001>

<llo_original>
// kernel: tpu_custom_call.1
$region0: #{tpu_custom_call.1}
  #allocation0 [shape = 'u32[]', space=smem, size = 0x4, offset = 0x4, fixed_abs, tag = 'smem constant byte address 0x4 - core index']
  #allocation1 [shape = 'u32[144,128]{1,0:T(1,128)}', space=vmem, size = 0x12000, scoped, tag = 'internal scratch']
  %s0 = inlined_call_operand.vmem [shape: bf16[2,32,64], index: 0, kind: input, shape index: {}]
  %s1 = inlined_call_operand.vmem [shape: s32[2,32,1], index: 1, kind: input, shape index: {}]
  %s2 = inlined_call_operand.vmem [shape: s32[2,1], index: 2, kind: input, shape index: {}]
  %s3 = inlined_call_operand.vmem [shape: bf16[64,128], index: 3, kind: input, shape index: {}]
  %s4 = inlined_call_operand.vmem [shape: f32[1,128], index: 4, kind: input, shape index: {}]
  %s5 = inlined_call_operand.vmem [shape: bf16[64,8], index: 5, kind: input, shape index: {}]
  %s6 = inlined_call_operand.vmem [shape: f32[1,8], index: 6, kind: input, shape index: {}]
  %s7 = inlined_call_operand.hbm [shape: f32[2,16,128], index: 7, kind: output, shape index: {}]
  %s8 = sld [smem:[#allocation0]]
  $region38: #{tpu_custom_call.1} parent=0
    _
  %s10 = ssub.s32 1, %s8
  %s11 = scalar_select 0, %s10, %s8
  $region1: #{tpu_custom_call.1} parent=0
    #allocation2 [shape = 'u8[16384]{0}', space=vmem, size = 0x4000, scoped, tag = 'output window, operand 0, single buffered']
    #allocation3 [shape = 's32[1]{0}', space=sflag, size = 0x4, scoped, tag = 'scoped memory for tpu_custom_call.1']
    %12 = vsyncpa [#allocation3], 0
    // Predicated region
    $region2: #{tpu_custom_call.1} parent=1 // pred_check
      _
    $region3: #{tpu_custom_call.1} parent=1 // pred_check_branch
      %14 = sbr.rel (0) target = $region5
    $region4: #{tpu_custom_call.1} parent=1 // pred_region
      _
    $region5: #{tpu_custom_call.1} parent=1 // pred_fallthru
      _
    // Predicated region
    $region6: #{tpu_custom_call.1} parent=1 // pred_check
      _
    $region7: #{tpu_custom_call.1} parent=1 // pred_check_branch
      %16 = sbr.rel (0) target = $region9
    $region8: #{tpu_custom_call.1} parent=1 // pred_region
      _
    $region9: #{tpu_custom_call.1} parent=1 // pred_fallthru
      _
    // Predicated region
    $region10: #{tpu_custom_call.1} parent=1 // pred_check
      _
    $region11: #{tpu_custom_call.1} parent=1 // pred_check_branch
      %18 = sbr.rel (0) target = $region13
    $region12: #{tpu_custom_call.1} parent=1 // pred_region
      _
    $region13: #{tpu_custom_call.1} parent=1 // pred_fallthru
      _
    // Predicated region
    $region14: #{tpu_custom_call.1} parent=1 // pred_check
      _
    $region15: #{tpu_custom_call.1} parent=1 // pred_check_branch
      %20 = sbr.rel (0) target = $region17
    $region16: #{tpu_custom_call.1} parent=1 // pred_region
      _
    $region17: #{tpu_custom_call.1} parent=1 // pred_fallthru
      _
    // Predicated region
    $region18: #{tpu_custom_call.1} parent=1 // pred_check
      _
    $region19: #{tpu_custom_call.1} parent=1 // pred_check_branch
      %22 = sbr.rel (0) target = $region21
    $region20: #{tpu_custom_call.1} parent=1 // pred_region
      _
    $region21: #{tpu_custom_call.1} parent=1 // pred_fallthru
      _
    // Predicated region
    $region22: #{tpu_custom_call.1} parent=1 // pred_check
      _
    $region23: #{tpu_custom_call.1} parent=1 // pred_check_branch
      %24 = sbr.rel (0) target = $region25
    $region24: #{tpu_custom_call.1} parent=1 // pred_region
      _
    $region25: #{tpu_custom_call.1} parent=1 // pred_fallthru
      _
    // Predicated region
    $region26: #{tpu_custom_call.1} parent=1 // pred_check
      _
    $region27: #{tpu_custom_call.1} parent=1 // pred_check_branch
      %26 = sbr.rel (0) target = $region29
    $region28: #{tpu_custom_call.1} parent=1 // pred_region
      _
    $region29: #{tpu_custom_call.1} parent=1 // pred_fallthru
      _
    %v28 = vld [vmem:[%s0] sm:$0xf]
    %v29 = vld [vmem:[%s0 + $0x4] sm:$0xf]
    %v30 = vld [vmem:[%s0 + $0x8] sm:$0xf]
    %v31 = vld [vmem:[%s0 + $0xc] sm:$0xf]
    %v32 = vld [vmem:[%s0 + $0x10] sm:$0xf]
    %v33 = vld [vmem:[%s0 + $0x14] sm:$0xf]
    %v34 = vld [vmem:[%s0 + $0x18] sm:$0xf]
    %v35 = vld [vmem:[%s0 + $0x1c] sm:$0xf]
    %v36 = vlaneseq
    %v37 = vand.u32 %v36, 127
    %v38 = vld [vmem:[%s1] sm:$0xff]
    %v39 = vld [vmem:[%s1 + $0x8] sm:$0xff]
    %v40 = vld [vmem:[%s1 + $0x10] sm:$0xff]
    %v41 = vld [vmem:[%s1 + $0x18] sm:$0xff]
    %v42 = vld [vmem:[%s1 + $0x20] sm:$0xff]
    %v43 = vld [vmem:[%s1 + $0x28] sm:$0xff]
    %v44 = vld [vmem:[%s1 + $0x30] sm:$0xff]
    %v45 = vld [vmem:[%s1 + $0x38] sm:$0xff]
    %46 = vset.pattern.permute.xlu0 0
    %47 = vperm.xlu0 %46, %v38
    %v48 = vpop.permute.xlu0 %47
    %49 = vset.pattern.permute.xlu0 0
    %50 = vperm.xlu0 %49, %v39
    %v51 = vpop.permute.xlu0 %50
    %52 = vset.pattern.permute.xlu0 0
    %53 = vperm.xlu0 %52, %v40
    %v54 = vpop.permute.xlu0 %53
    %55 = vset.pattern.permute.xlu0 0
    %56 = vperm.xlu0 %55, %v41
    %v57 = vpop.permute.xlu0 %56
    %58 = vset.pattern.permute.xlu0 0
    %59 = vperm.xlu0 %58, %v42
    %v60 = vpop.permute.xlu0 %59
    %61 = vset.pattern.permute.xlu0 0
    %62 = vperm.xlu0 %61, %v43
    %v63 = vpop.permute.xlu0 %62
    %64 = vset.pattern.permute.xlu0 0
    %65 = vperm.xlu0 %64, %v44
    %v66 = vpop.permute.xlu0 %65
    %67 = vset.pattern.permute.xlu0 0
    %68 = vperm.xlu0 %67, %v45
    %v69 = vpop.permute.xlu0 %68
    %vm70 = vcmp.eq.s32.totalorder %v37, %v48
    %vm71 = vcmp.eq.s32.totalorder %v37, %v51
    %vm72 = vcmp.eq.s32.totalorder %v37, %v54
    %vm73 = vcmp.eq.s32.totalorder %v37, %v57
    %vm74 = vcmp.eq.s32.totalorder %v37, %v60
    %vm75 = vcmp.eq.s32.totalorder %v37, %v63
    %vm76 = vcmp.eq.s32.totalorder %v37, %v66
    %vm77 = vcmp.eq.s32.totalorder %v37, %v69
    %v78 = vsel %vm70, 1.0, 0.0
    %v79 = vsel %vm71, 1.0, 0.0
    %v80 = vsel %vm72, 1.0, 0.0
    %v81 = vsel %vm73, 1.0, 0.0
    %v82 = vsel %vm74, 1.0, 0.0
    %v83 = vsel %vm75, 1.0, 0.0
    %v84 = vsel %vm76, 1.0, 0.0
    %v85 = vsel %vm77, 1.0, 0.0
    %v86 = vpack.c.bf16 %v79, %v78
    %v87 = vpack.c.bf16 %v81, %v80
    %v88 = vpack.c.bf16 %v83, %v82
    %v89 = vpack.c.bf16 %v85, %v84
    %v94 = vunpack.c.l.b16 %v28
    %v95 = vunpack.c.l.b16 %v29
    %v96 = vunpack.c.l.b16 %v30
    %v97 = vunpack.c.l.b16 %v31
    %v98 = vpack.c.b16 %v95, %v94
    %v99 = vpack.c.b16 %v97, %v96
    %vm102 = vcmask 261120
    %v104 = vsel %vm102, %v86, 0
    %v107 = vsel %vm102, %v87, 0
    %109 = vmatprep.subr.bf16.mxu0 0
    %110 = vmatpush1.bf16.msra.mxu0 0
    %111 = vmatprep.subr.bf16.mxu0 0
    %112 = vmatpush1.bf16.msra.mxu0 0
    %113 = vmatprep.subr.bf16.mxu0 0
    %114 = vmatpush1.bf16.msra.mxu0 0
    %115 = vmatprep.subr.bf16.mxu0 0
    %116 = vmatpush1.bf16.msra.mxu0 0
    %117 = vmatprep.subr.bf16.mxu0 0
    %118 = vmatpush1.bf16.msra.mxu0 0
    %119 = vmatprep.subr.bf16.mxu0 0
    %120 = vmatpush1.bf16.msra.mxu0 0
    %121 = vmatprep.subr.bf16.mxu0 0
    %122 = vmatpush1.bf16.msra.mxu0 %v99
    %123 = vmatprep.subr.bf16.mxu0 0
    %124 = vmatpush1.bf16.msra.mxu0 %v98
    %125 = vmatprep.subr.bf16.mxu0 0
    %126 = vmatpush2.bf16.msra.mxu0 0
    %127 = vmatprep.subr.bf16.mxu0 0
    %128 = vmatpush2.bf16.msra.mxu0 0
    %129 = vmatprep.subr.bf16.mxu0 0
    %130 = vmatpush2.bf16.msra.mxu0 0
    %131 = vmatprep.subr.bf16.mxu0 0
    %132 = vmatpush2.bf16.msra.mxu0 0
    %133 = vmatprep.subr.bf16.mxu0 0
    %134 = vmatpush2.bf16.msra.mxu0 0
    %135 = vmatprep.subr.bf16.mxu0 0
    %136 = vmatpush2.bf16.msra.mxu0 0
    %137 = vmatprep.subr.bf16.mxu0 0
    %138 = vmatpush2.bf16.msra.mxu0 0
    %139 = vmatprep.subr.bf16.mxu0 0
    %140 = vmatpush2.bf16.msra.mxu0 0
    %141 = vmatprep.mubr.bf16.mxu0 0
    %142 = vmatmul.mubr.bf16.gmra.mxu0 %v104
    %v143 = vpop.f32.mrf.mxu0
    %v144 = vadd.f32 0.0, %v143
    %v145 = vpop.f32.mrf.mxu0
    %v146 = vpop.f32.mrf.mxu0
    %v147 = vadd.f32 0.0, %v146
    %v148 = vpop.f32.mrf.mxu0
    %149 = vmatprep.mubr.bf16.mxu0 0
    %150 = vmatmul.mubr.bf16.gmra.mxu0 %v107
    %v151 = vpop.f32.mrf.mxu0
    %v152 = vadd.f32 0.0, %v151
    %v153 = vpop.f32.mrf.mxu0
    %v154 = vpop.f32.mrf.mxu0
    %v155 = vadd.f32 0.0, %v154
    %v156 = vpop.f32.mrf.mxu0
    %157 = vdwg.mxu0
    %v162 = vunpack.c.l.b16 %v32
    %v163 = vunpack.c.l.b16 %v33
    %v164 = vunpack.c.l.b16 %v34
    %v165 = vunpack.c.l.b16 %v35
    %v166 = vpack.c.b16 %v163, %v162
    %v167 = vpack.c.b16 %v165, %v164
    %v171 = vsel %vm102, %v88, 0
    %v174 = vsel %vm102, %v89, 0
    %176 = vmatprep.subr.bf16.mxu0 0
    %177 = vmatpush1.bf16.msra.mxu0 0
    %178 = vmatprep.subr.bf16.mxu0 0
    %179 = vmatpush1.bf16.msra.mxu0 0
    %180 = vmatprep.subr.bf16.mxu0 0
    %181 = vmatpush1.bf16.msra.mxu0 0
    %182 = vmatprep.subr.bf16.mxu0 0
    %183 = vmatpush1.bf16.msra.mxu0 0
    %184 = vmatprep.subr.bf16.mxu0 0
    %185 = vmatpush1.bf16.msra.mxu0 0
    %186 = vmatprep.subr.bf16.mxu0 0
    %187 = vmatpush1.bf16.msra.mxu0 0
    %188 = vmatprep.subr.bf16.mxu0 0
    %189 = vmatpush1.bf16.msra.mxu0 %v167
    %190 = vmatprep.subr.bf16.mxu0 0
    %191 = vmatpush1.bf16.msra.mxu0 %v166
    %192 = vmatprep.subr.bf16.mxu0 0
    %193 = vmatpush2.bf16.msra.mxu0 0
    %194 = vmatprep.subr.bf16.mxu0 0
    %195 = vmatpush2.bf16.msra.mxu0 0
    %196 = vmatprep.subr.bf16.mxu0 0
    %197 = vmatpush2.bf16.msra.mxu0 0
    %198 = vmatprep.subr.bf16.mxu0 0
    %199 = vmatpush2.bf16.msra.mxu0 0
    %200 = vmatprep.subr.bf16.mxu0 0
    %201 = vmatpush2.bf16.msra.mxu0 0
    %202 = vmatprep.subr.bf16.mxu0 0
    %203 = vmatpush2.bf16.msra.mxu0 0
    %204 = vmatprep.subr.bf16.mxu0 0
    %205 = vmatpush2.bf16.msra.mxu0 0
    %206 = vmatprep.subr.bf16.mxu0 0
    %207 = vmatpush2.bf16.msra.mxu0 0
    %208 = vmatprep.mubr.bf16.mxu0 0
    %209 = vmatmul.mubr.bf16.gmra.mxu0 %v171
    %v210 = vpop.f32.mrf.mxu0
    %v211 = vadd.f32 0.0, %v210
    %v212 = vpop.f32.mrf.mxu0
    %v213 = vpop.f32.mrf.mxu0
    %v214 = vadd.f32 0.0, %v213
    %v215 = vpop.f32.mrf.mxu0
    %216 = vmatprep.mubr.bf16.mxu0 0
    %217 = vmatmul.mubr.bf16.gmra.mxu0 %v174
    %v218 = vpop.f32.mrf.mxu0
    %v219 = vadd.f32 0.0, %v218
    %v220 = vpop.f32.mrf.mxu0
    %v221 = vpop.f32.mrf.mxu0
    %v222 = vadd.f32 0.0, %v221
    %v223 = vpop.f32.mrf.mxu0
    %224 = vdwg.mxu0
    %v225 = vpack.c.bf16 %v147, %v144
    %v226 = vpack.c.bf16 %v155, %v152
    %v227 = vpack.c.bf16 %v214, %v211
    %v228 = vpack.c.bf16 %v222, %v219
    %v229 = vld [vmem:[%s3] sm:$0xf]
    %v230 = vld [vmem:[%s3 + $0x4] sm:$0xf]
    %v231 = vld [vmem:[%s3 + $0x8] sm:$0xf]
    %v232 = vld [vmem:[%s3 + $0xc] sm:$0xf]
    %v233 = vld [vmem:[%s3 + $0x10] sm:$0xf]
    %v234 = vld [vmem:[%s3 + $0x14] sm:$0xf]
    %v235 = vld [vmem:[%s3 + $0x18] sm:$0xf]
    %v236 = vld [vmem:[%s3 + $0x1c] sm:$0xf]
    %v237 = vld [vmem:[%s4] sm:$0x1]
    %v239 = vlaneseq
    %v240 = vshrl.u32 %v239, 7
    %v241 = vsub.s32 0, %v240
    %v242 = vrot.slane %v237, %v241
    %v252 = vunpack.c.l.b16 %v229
    %v253 = vunpack.c.l.b16 %v230
    %v254 = vunpack.c.l.b16 %v231
    %v255 = vunpack.c.l.b16 %v232
    %v256 = vunpack.c.l.b16 %v233
    %v257 = vunpack.c.l.b16 %v234
    %v258 = vunpack.c.l.b16 %v235
    %v259 = vunpack.c.l.b16 %v236
    %v260 = vpack.c.b16 %v253, %v252
    %v261 = vpack.c.b16 %v255, %v254
    %v262 = vpack.c.b16 %v257, %v256
    %v263 = vpack.c.b16 %v259, %v258
    %vm268 = vcmask 523264
    %v270 = vsel %vm268, %v225, 0
    %v273 = vsel %vm268, %v226, 0
    %v276 = vsel %vm268, %v227, 0
    %v279 = vsel %vm268, %v228, 0
    %281 = vmatprep.subr.bf16.mxu0 0
    %282 = vmatpush1.bf16.msra.mxu0 0
    %283 = vmatprep.subr.bf16.mxu0 0
    %284 = vmatpush1.bf16.msra.mxu0 0
    %285 = vmatprep.subr.bf16.mxu0 0
    %286 = vmatpush1.bf16.msra.mxu0 0
    %287 = vmatprep.subr.bf16.mxu0 0
    %288 = vmatpush1.bf16.msra.mxu0 0
    %289 = vmatprep.subr.bf16.mxu0 0
    %290 = vmatpush1.bf16.msra.mxu0 %v263
    %291 = vmatprep.subr.bf16.mxu0 0
    %292 = vmatpush1.bf16.msra.mxu0 %v262
    %293 = vmatprep.subr.bf16.mxu0 0
    %294 = vmatpush1.bf16.msra.mxu0 %v261
    %295 = vmatprep.subr.bf16.mxu0 0
    %296 = vmatpush1.bf16.msra.mxu0 %v260
    %297 = vmatprep.subr.bf16.mxu0 0
    %298 = vmatpush2.bf16.msra.mxu0 0
    %299 = vmatprep.subr.bf16.mxu0 0
    %300 = vmatpush2.bf16.msra.mxu0 0
    %301 = vmatprep.subr.bf16.mxu0 0
    %302 = vmatpush2.bf16.msra.mxu0 0
    %303 = vmatprep.subr.bf16.mxu0 0
    %304 = vmatpush2.bf16.msra.mxu0 0
    %305 = vmatprep.subr.bf16.mxu0 0
    %306 = vmatpush2.bf16.msra.mxu0 0
    %307 = vmatprep.subr.bf16.mxu0 0
    %308 = vmatpush2.bf16.msra.mxu0 0
    %309 = vmatprep.subr.bf16.mxu0 0
    %310 = vmatpush2.bf16.msra.mxu0 0
    %311 = vmatprep.subr.bf16.mxu0 0
    %312 = vmatpush2.bf16.msra.mxu0 0
    %313 = vmatprep.mubr.bf16.mxu0 0
    %314 = vmatmul.mubr.bf16.gmra.mxu0 %v270
    %v315 = vpop.f32.mrf.mxu0
    %v316 = vadd.f32 %v242, %v315
    %v317 = vpop.f32.mrf.mxu0
    %v318 = vpop.f32.mrf.mxu0
    %v319 = vadd.f32 %v242, %v318
    %v320 = vpop.f32.mrf.mxu0
    %321 = vmatprep.mubr.bf16.mxu0 0
    %322 = vmatmul.mubr.bf16.gmra.mxu0 %v273
    %v323 = vpop.f32.mrf.mxu0
    %v324 = vadd.f32 %v242, %v323
    %v325 = vpop.f32.mrf.mxu0
    %v326 = vpop.f32.mrf.mxu0
    %v327 = vadd.f32 %v242, %v326
    %v328 = vpop.f32.mrf.mxu0
    %329 = vmatprep.mubr.bf16.mxu0 0
    %330 = vmatmul.mubr.bf16.gmra.mxu0 %v276
    %v331 = vpop.f32.mrf.mxu0
    %v332 = vadd.f32 %v242, %v331
    %v333 = vpop.f32.mrf.mxu0
    %v334 = vpop.f32.mrf.mxu0
    %v335 = vadd.f32 %v242, %v334
    %v336 = vpop.f32.mrf.mxu0
    %337 = vmatprep.mubr.bf16.mxu0 0
    %338 = vmatmul.mubr.bf16.gmra.mxu0 %v279
    %v339 = vpop.f32.mrf.mxu0
    %v340 = vadd.f32 %v242, %v339
    %v341 = vpop.f32.mrf.mxu0
    %v342 = vpop.f32.mrf.mxu0
    %v343 = vadd.f32 %v242, %v342
    %v344 = vpop.f32.mrf.mxu0
    %345 = vdwg.mxu0
    %v346 = vpack.c.bf16 %v319, %v316
    %v347 = vpack.c.bf16 %v335, %v332
    %v348 = vpack.c.bf16 %v327, %v324
    %v349 = vpack.c.bf16 %v343, %v340
    %v350 = vld [vmem:[%s5] sm:$0xf]
    %v351 = vld [vmem:[%s5 + $0x4] sm:$0xf]
    %v352 = vld [vmem:[%s5 + $0x8] sm:$0xf]
    %v353 = vld [vmem:[%s5 + $0xc] sm:$0xf]
    %v354 = vld [vmem:[%s5 + $0x10] sm:$0xf]
    %v355 = vld [vmem:[%s5 + $0x14] sm:$0xf]
    %v356 = vld [vmem:[%s5 + $0x18] sm:$0xf]
    %v357 = vld [vmem:[%s5 + $0x1c] sm:$0xf]
    %v358 = vld [vmem:[%s6] sm:$0x1]
    %v360 = vlaneseq
    %v361 = vshrl.u32 %v360, 7
    %v362 = vsub.s32 0, %v361
    %v363 = vrot.slane %v358, %v362
    %v373 = vunpack.c.l.b16 %v350
    %v374 = vunpack.c.l.b16 %v351
    %v375 = vunpack.c.l.b16 %v352
    %v376 = vunpack.c.l.b16 %v353
    %v377 = vunpack.c.l.b16 %v354
    %v378 = vunpack.c.l.b16 %v355
    %v379 = vunpack.c.l.b16 %v356
    %v380 = vunpack.c.l.b16 %v357
    %v381 = vpack.c.b16 %v374, %v373
    %v382 = vpack.c.b16 %v376, %v375
    %v383 = vpack.c.b16 %v378, %v377
    %v384 = vpack.c.b16 %v380, %v379
    %389 = vmatprep.subr.bf16.mxu0 0
    %390 = vmatpush1.bf16.msra.mxu0 0
    %391 = vmatprep.subr.bf16.mxu0 0
    %392 = vmatpush1.bf16.msra.mxu0 0
    %393 = vmatprep.subr.bf16.mxu0 0
    %394 = vmatpush1.bf16.msra.mxu0 0
    %395 = vmatprep.subr.bf16.mxu0 0
    %396 = vmatpush1.bf16.msra.mxu0 0
    %397 = vmatprep.subr.bf16.mxu0 0
    %398 = vmatpush1.bf16.msra.mxu0 %v384
    %399 = vmatprep.subr.bf16.mxu0 0
    %400 = vmatpush1.bf16.msra.mxu0 %v383
    %401 = vmatprep.subr.bf16.mxu0 0
    %402 = vmatpush1.bf16.msra.mxu0 %v382
    %403 = vmatprep.subr.bf16.mxu0 0
    %404 = vmatpush1.bf16.msra.mxu0 %v381
    %405 = vmatprep.subr.bf16.mxu0 0
    %406 = vmatpush2.bf16.msra.mxu0 0
    %407 = vmatprep.subr.bf16.mxu0 0
    %408 = vmatpush2.bf16.msra.mxu0 0
    %409 = vmatprep.subr.bf16.mxu0 0
    %410 = vmatpush2.bf16.msra.mxu0 0
    %411 = vmatprep.subr.bf16.mxu0 0
    %412 = vmatpush2.bf16.msra.mxu0 0
    %413 = vmatprep.subr.bf16.mxu0 0
    %414 = vmatpush2.bf16.msra.mxu0 0
    %415 = vmatprep.subr.bf16.mxu0 0
    %416 = vmatpush2.bf16.msra.mxu0 0
    %417 = vmatprep.subr.bf16.mxu0 0
    %418 = vmatpush2.bf16.msra.mxu0 0
    %419 = vmatprep.subr.bf16.mxu0 0
    %420 = vmatpush2.bf16.msra.mxu0 0
    %421 = vmatprep.mubr.bf16.mxu0 0
    %422 = vmatmul.mubr.bf16.gmra.mxu0 %v270
    %v423 = vpop.f32.mrf.mxu0
    %v424 = vadd.f32 %v363, %v423
    %v425 = vpop.f32.mrf.mxu0
    %v426 = vpop.f32.mrf.mxu0
    %v427 = vadd.f32 %v363, %v426
    %v428 = vpop.f32.mrf.mxu0
    %429 = vmatprep.mubr.bf16.mxu0 0
    %430 = vmatmul.mubr.bf16.gmra.mxu0 %v276
    %v431 = vpop.f32.mrf.mxu0
    %v432 = vadd.f32 %v363, %v431
    %v433 = vpop.f32.mrf.mxu0
    %v434 = vpop.f32.mrf.mxu0
    %v435 = vadd.f32 %v363, %v434
    %v436 = vpop.f32.mrf.mxu0
    %437 = vdwg.mxu0
    %439 = vrot.lane.b32.xlu0 %v348, 64
    %v440 = vpop.permute.xlu0 %439
    %v442 = vsel %vm268, %v346, 0
    %v445 = vsel %vm268, %v440, 0
    %447 = vmatprep.subr.bf16.mxu0 0
    %448 = vmatpush1.bf16.xpose.msra.mxu0 0
    %449 = vmatprep.subr.bf16.mxu0 0
    %450 = vmatpush1.bf16.xpose.msra.mxu0 0
    %451 = vmatprep.subr.bf16.mxu0 0
    %452 = vmatpush1.bf16.xpose.msra.mxu0 0
    %453 = vmatprep.subr.bf16.mxu0 0
    %454 = vmatpush1.bf16.xpose.msra.mxu0 0
    %455 = vmatprep.subr.bf16.mxu0 0
    %456 = vmatpush1.bf16.xpose.msra.mxu0 0
    %457 = vmatprep.subr.bf16.mxu0 0
    %458 = vmatpush1.bf16.xpose.msra.mxu0 0
    %459 = vmatprep.subr.bf16.mxu0 0
    %460 = vmatpush1.bf16.xpose.msra.mxu0 0
    %461 = vmatprep.subr.bf16.mxu0 0
    %462 = vmatpush1.bf16.xpose.msra.mxu0 %v445
    %463 = vmatprep.subr.bf16.mxu0 0
    %464 = vmatpush2.bf16.xpose.msra.mxu0 0
    %465 = vmatprep.subr.bf16.mxu0 0
    %466 = vmatpush2.bf16.xpose.msra.mxu0 0
    %467 = vmatprep.subr.bf16.mxu0 0
    %468 = vmatpush2.bf16.xpose.msra.mxu0 0
    %469 = vmatprep.subr.bf16.mxu0 0
    %470 = vmatpush2.bf16.xpose.msra.mxu0 0
    %471 = vmatprep.subr.bf16.mxu0 0
    %472 = vmatpush2.bf16.xpose.msra.mxu0 0
    %473 = vmatprep.subr.bf16.mxu0 0
    %474 = vmatpush2.bf16.xpose.msra.mxu0 0
    %475 = vmatprep.subr.bf16.mxu0 0
    %476 = vmatpush2.bf16.xpose.msra.mxu0 0
    %477 = vmatprep.subr.bf16.mxu0 0
    %478 = vmatpush2.bf16.xpose.msra.mxu0 0
    %479 = vmatprep.mubr.bf16.mxu0 0
    %480 = vmatmul.mubr.bf16.gmra.mxu0 %v442
    %v481 = vpop.f32.mrf.mxu0
    %v482 = vadd.f32 0.0, %v481
    %v483 = vpop.f32.mrf.mxu0
    %v484 = vpop.f32.mrf.mxu0
    %v485 = vadd.f32 0.0, %v484
    %v486 = vpop.f32.mrf.mxu0
    %487 = vdwg.mxu0
    %489 = vrot.lane.b32.xlu0 %v349, 64
    %v490 = vpop.permute.xlu0 %489
    %v492 = vsel %vm268, %v347, 0
    %v495 = vsel %vm268, %v490, 0
    %497 = vmatprep.subr.bf16.mxu0 0
    %498 = vmatpush1.bf16.xpose.msra.mxu0 0
    %499 = vmatprep.subr.bf16.mxu0 0
    %500 = vmatpush1.bf16.xpose.msra.mxu0 0
    %501 = vmatprep.subr.bf16.mxu0 0
    %502 = vmatpush1.bf16.xpose.msra.mxu0 0
    %503 = vmatprep.subr.bf16.mxu0 0
    %504 = vmatpush1.bf16.xpose.msra.mxu0 0
    %505 = vmatprep.subr.bf16.mxu0 0
    %506 = vmatpush1.bf16.xpose.msra.mxu0 0
    %507 = vmatprep.subr.bf16.mxu0 0
    %508 = vmatpush1.bf16.xpose.msra.mxu0 0
    %509 = vmatprep.subr.bf16.mxu0 0
    %510 = vmatpush1.bf16.xpose.msra.mxu0 0
    %511 = vmatprep.subr.bf16.mxu0 0
    %512 = vmatpush1.bf16.xpose.msra.mxu0 %v495
    %513 = vmatprep.subr.bf16.mxu0 0
    %514 = vmatpush2.bf16.xpose.msra.mxu0 0
    %515 = vmatprep.subr.bf16.mxu0 0
    %516 = vmatpush2.bf16.xpose.msra.mxu0 0
    %517 = vmatprep.subr.bf16.mxu0 0
    %518 = vmatpush2.bf16.xpose.msra.mxu0 0
    %519 = vmatprep.subr.bf16.mxu0 0
    %520 = vmatpush2.bf16.xpose.msra.mxu0 0
    %521 = vmatprep.subr.bf16.mxu0 0
    %522 = vmatpush2.bf16.xpose.msra.mxu0 0
    %523 = vmatprep.subr.bf16.mxu0 0
    %524 = vmatpush2.bf16.xpose.msra.mxu0 0
    %525 = vmatprep.subr.bf16.mxu0 0
    %526 = vmatpush2.bf16.xpose.msra.mxu0 0
    %527 = vmatprep.subr.bf16.mxu0 0
    %528 = vmatpush2.bf16.xpose.msra.mxu0 0
    %529 = vmatprep.mubr.bf16.mxu0 0
    %530 = vmatmul.mubr.bf16.gmra.mxu0 %v492
    %v531 = vpop.f32.mrf.mxu0
    %v532 = vadd.f32 0.0, %v531
    %v533 = vpop.f32.mrf.mxu0
    %v534 = vpop.f32.mrf.mxu0
    %v535 = vadd.f32 0.0, %v534
    %v536 = vpop.f32.mrf.mxu0
    %537 = vdwg.mxu0
    %v538 = vld [vmem:[%s2] sm:$0x3]
    %v540 = vunpack.c.l.s4 1966171168
    %v541 = vunpack.c.0.s8 %v540
    %v542 = vlaneseq
    %v543 = vshrl.u32 %v542, 7
    %v544 = vsub.s32 %v541, %v543
    %v545 = vrot.slane %v538, %v544
    %v546 = vcombine.high %v545, %v545
    %v548 = vunpack.c.l.s4 1966171168
    %v549 = vunpack.c.0.s8 %v548
    %v550 = vlaneseq
    %v551 = vshrl.u32 %v550, 7
    %v552 = vsub.s32 %v549, %v551
    %v553 = vrot.slane %v545, %v552
    %v555 = vunpack.c.l.s4 1966171168
    %v556 = vunpack.c.0.s8 %v555
    %v557 = vlaneseq
    %v558 = vshrl.u32 %v557, 7
    %v559 = vsub.s32 %v556, %v558
    %v560 = vrot.slane %v546, %v559
    %v561 = vlaneseq
    %v562 = vshrl.u32 %v561, 7
    %v563 = vsub.s32 0, %v562
    %v564 = vrot.slane %v553, %v563
    %v565 = vlaneseq
    %v566 = vshrl.u32 %v565, 7
    %v567 = vsub.s32 0, %v566
    %v568 = vrot.slane %v560, %v567
    %569 = vset.pattern.permute.xlu0 0
    %570 = vperm.xlu0 %569, %v564
    %v571 = vpop.permute.xlu0 %570
    %572 = vset.pattern.permute.xlu0 0
    %573 = vperm.xlu0 %572, %v568
    %v574 = vpop.permute.xlu0 %573
    %vm575 = vcmp.lt.s32.totalorder %v37, %v571
    %vm576 = vcmp.lt.s32.totalorder %v37, %v574
    %v577 = vsel %vm575, %v482, -1e+30
    %v578 = vsel %vm575, %v485, -1e+30
    %v579 = vsel %vm576, %v532, -1e+30
    %v580 = vsel %vm576, %v535, -1e+30
    %vm581 = vcmask 130048
    %v582 = vsel %vm581, %v577, -inf
    %583 = vmax.xlane.f32.xlu0 %v582
    %v584 = vpop.xlane.xlu0 %583
    %v585 = vsel %vm581, %v578, -inf
    %586 = vmax.xlane.f32.xlu0 %v585
    %v587 = vpop.xlane.xlu0 %586
    %v588 = vsel %vm581, %v579, -inf
    %589 = vmax.xlane.f32.xlu0 %v588
    %v590 = vpop.xlane.xlu0 %589
    %v591 = vsel %vm581, %v580, -inf
    %592 = vmax.xlane.f32.xlu0 %v591
    %v593 = vpop.xlane.xlu0 %592
    %v594 = vsub.f32 %v577, %v584
    %v595 = vsub.f32 %v578, %v587
    %v596 = vsub.f32 %v579, %v590
    %v597 = vsub.f32 %v580, %v593
    %v598 = vmul.f32 %v594, 1.442695
    %v599 = vpow.pop %v598
    %v600 = vmul.f32 %v595, 1.442695
    %v601 = vpow.pop %v600
    %v602 = vmul.f32 %v596, 1.442695
    %v603 = vpow.pop %v602
    %v604 = vmul.f32 %v597, 1.442695
    %v605 = vpow.pop %v604
    %v606 = vsel %vm581, %v599, 0.0
    %607 = vadd.xlane.f32.xlu0 %v606
    %v608 = vpop.xlane.xlu0 %607
    %v609 = vsel %vm581, %v601, 0.0
    %610 = vadd.xlane.f32.xlu0 %v609
    %v611 = vpop.xlane.xlu0 %610
    %v612 = vsel %vm581, %v603, 0.0
    %613 = vadd.xlane.f32.xlu0 %v612
    %v614 = vpop.xlane.xlu0 %613
    %v615 = vsel %vm581, %v605, 0.0
    %616 = vadd.xlane.f32.xlu0 %v615
    %v617 = vpop.xlane.xlu0 %616
    %v618 = vrcp.pop %v608
    %v619 = vrcp.pop %v611
    %v620 = vrcp.pop %v614
    %v621 = vrcp.pop %v617
    %v622 = vmul.f32 %v599, %v618
    %v623 = vmul.f32 %v601, %v619
    %v624 = vmul.f32 %v603, %v620
    %v625 = vmul.f32 %v605, %v621
    %630 = vrot.lane.b32.xlu0 %v424, 16
    %v631 = vpop.permute.xlu0 %630
    %632 = vrot.lane.b32.xlu0 %v427, 16
    %v633 = vpop.permute.xlu0 %632
    %634 = vrot.lane.b32.xlu0 %v432, 16
    %v635 = vpop.permute.xlu0 %634
    %636 = vrot.lane.b32.xlu0 %v435, 16
    %v637 = vpop.permute.xlu0 %636
    %v642 = vsel %vm581, %v622, %v631
    %v643 = vsel %vm581, %v623, %v633
    %v644 = vsel %vm581, %v624, %v635
    %v645 = vsel %vm581, %v625, %v637
    %vm646 = vcmask 195584
    %v647 = vsel %vm646, %v642, 0.0
    %v648 = vsel %vm646, %v643, 0.0
    %v649 = vsel %vm646, %v644, 0.0
    %v650 = vsel %vm646, %v645, 0.0
    %651 = vst [vmem:[#allocation2] sm:$0xff] %v647
    %652 = vst [vmem:[#allocation2 + $0x8] sm:$0xff] %v648
    %653 = vst [vmem:[#allocation2 + $0x10] sm:$0xff] %v649
    %654 = vst [vmem:[#allocation2 + $0x18] sm:$0xff] %v650
    // Predicated region
    $region30: #{tpu_custom_call.1} parent=1 // pred_check
      _
    $region31: #{tpu_custom_call.1} parent=1 // pred_check_branch
      %656 = sbr.rel (0) target = $region33
    $region32: #{tpu_custom_call.1} parent=1 // pred_region
      %s658 = ssub.s32 512, 512
      %659 = vsyncadd [#allocation3], %s658
      %s660 = sshll.u32 [#allocation2], 4
      %s661 = int_to_ptr.vmem [resolvable:$true] %s660
      %666 = dma.vmem_to_hbm [thread:$0]  %s661, 512, %s7, [#allocation3], 128, 128, 8
    $region33: #{tpu_custom_call.1} parent=1 // pred_fallthru
      _
    // Predicated region
    $region34: #{tpu_custom_call.1} parent=1 // pred_check
      _
    $region35: #{tpu_custom_call.1} parent=1 // pred_check_branch
      %668 = sbr.rel (0) target = $region37
    $region36: #{tpu_custom_call.1} parent=1 // pred_region
      %669 = dma.done [#allocation3], 512
    $region37: #{tpu_custom_call.1} parent=1 // pred_fallthru
      _
    %670 = vsyncpa [#allocation3], 1

</llo_original>
